<compile_context>
chip_gen: v5e
topology: v5e:2x2
jax: 0.10.0
libtpu: 0.0.40
codegen_flags: <defaults>
</compile_context>

<pallas_src>
import functools

import jax
import jax.numpy as jnp
from jax import lax
from jax.experimental import pallas as pl
from jax.experimental.pallas import tpu as pltpu


_LOG2E = 1.4426950408889634
_NEG_FILL = -1000000000.0                 # matches masked_fill_(mask, -1e9)
_NEG_FILL_2 = _NEG_FILL * _LOG2E          # same value in the exp2 domain


def _fast_recip(x):
    # EUP approximate reciprocal + one Newton step (restores ~f32 accuracy).
    r = pl.reciprocal(x, approx=True)
    return r * (2.0 - x * r)


# --------------------------------------------------------------------------
# Kernels
# --------------------------------------------------------------------------

def _sdpa_kernel_with_attn(q_ref, k_ref, v_ref, msk_ref, ctx_ref, attn_ref,
                           *, alpha):
    # Blocks: q (1,1,Tq,D), k/v (1,1,Lk,D), mask (1,1,Tq,Lk) int8 (!=0 => masked).
    q = q_ref[0, 0] * alpha                 # scale*log2e folded into Q (own dtype)
    k = k_ref[0, 0]
    v = v_ref[0, 0]
    msk = msk_ref[0, 0]

    # Q @ K^T with K in its natural (Lk, D) layout — no transpose.
    t = lax.dot_general(q, k, dimension_numbers=(((1,), (1,)), ((), ())),
                        preferred_element_type=jnp.float32)   # (Tq, Lk), exp2-domain
    t = jnp.where(msk != 0, _NEG_FILL_2, t)

    row_max = jnp.max(t, axis=-1, keepdims=True)
    e = jnp.exp2(t - row_max)
    denom = jnp.sum(e, axis=-1, keepdims=True)
    attn = e * _fast_recip(denom)

    ctx = lax.dot_general(attn.astype(v.dtype), v,
                          dimension_numbers=(((1,), (0,)), ((), ())),
                          preferred_element_type=jnp.float32)

    attn_ref[0, 0] = attn.astype(attn_ref.dtype)
    ctx_ref[0, 0] = ctx.astype(ctx_ref.dtype)


def _sdpa_flash_kernel(q_ref, k_ref, v_ref, msk_ref, ctx_ref,
                       m_sc, l_sc, acc_sc, *, alpha):
    # Online softmax over kv tiles (last grid axis, "arbitrary").
    ki = pl.program_id(3)

    @pl.when(ki == 0)
    def _():
        m_sc[...] = jnp.full_like(m_sc, -jnp.inf)
        l_sc[...] = jnp.zeros_like(l_sc)
        acc_sc[...] = jnp.zeros_like(acc_sc)

    q = q_ref[0, 0] * alpha
    k = k_ref[0, 0]
    v = v_ref[0, 0]
    msk = msk_ref[0, 0]

    t = lax.dot_general(q, k, dimension_numbers=(((1,), (1,)), ((), ())),
                        preferred_element_type=jnp.float32)   # (Tq, Tk)
    t = jnp.where(msk != 0, _NEG_FILL_2, t)

    m_prev = m_sc[...]
    m_new = jnp.maximum(m_prev, jnp.max(t, axis=-1, keepdims=True))
    corr = jnp.exp2(m_prev - m_new)
    p = jnp.exp2(t - m_new)
    l_sc[...] = corr * l_sc[...] + jnp.sum(p, axis=-1, keepdims=True)
    acc_sc[...] = corr * acc_sc[...] + lax.dot_general(
        p.astype(v.dtype), v, dimension_numbers=(((1,), (0,)), ((), ())),
        preferred_element_type=jnp.float32)
    m_sc[...] = m_new

    @pl.when(ki == pl.num_programs(3) - 1)
    def _():
        ctx_ref[0, 0] = (acc_sc[...] * _fast_recip(l_sc[...])).astype(ctx_ref.dtype)


# --------------------------------------------------------------------------
# VMEM-aware tiling helpers
# --------------------------------------------------------------------------

def _vmem_budget_bytes():
    # Generation-aware: v5e/v6e have 128 MiB/core, v7x only 64 MiB.
    try:
        cap = int(pltpu.get_tpu_info().vmem_capacity_bytes)
    except Exception:
        cap = 128 << 20
    return (cap * 3) // 4          # leave ~25% headroom for compiler scratch


def _tile_candidates(n, caps):
    cands = [t for t in caps if t <= n and n % t == 0]
    return cands if cands else [n]           # full extent is always legal


def _attn_path_vmem(tq, lk, d, isz, attn_isz):
    blocks = 2 * (tq * d * isz            # Q (double-buffered)
                  + 2 * lk * d * isz      # K + V
                  + tq * lk * 1           # int8 mask
                  + tq * d * isz          # ctx out
                  + tq * lk * attn_isz)   # attn out
    temps = 3 * tq * lk * 4               # f32 score / exp / attn temporaries
    return blocks + temps


def _flash_path_vmem(tq, tk, d, isz):
    blocks = 2 * (tq * d * isz + 2 * tk * d * isz + tq * tk * 1 + tq * d * isz)
    scratch = (2 * tq + tq * d) * 4
    temps = 3 * tq * tk * 4
    return blocks + scratch + temps


def _vmem_limit(need, budget):
    return int(min(max(need + (4 << 20), 16 << 20), budget))


# --------------------------------------------------------------------------
# Public wrapper
# --------------------------------------------------------------------------

def scaled_dot_product_attention(Q, K, V, attn_mask, *, return_attn=True,
                                 q_tile=None, kv_tile=None):
    """Pallas TPU ScaledDotProductAttention.

    Q: [B,H,Lq,D], K/V: [B,H,Lk,D], attn_mask: [B,H,Lq,Lk] (bool/numeric,
    nonzero = masked).  Returns (context, attn) like the PyTorch module, or
    just `context` when return_attn=False (flash path, no O(Lq*Lk) HBM write).
    """
    B, H, Lq, D = Q.shape
    Lk = K.shape[2]
    assert K.shape == (B, H, Lk, D) and V.shape == (B, H, Lk, D)
    assert attn_mask.shape == (B, H, Lq, Lk)

    # 1 byte/element mask stream (half the old bf16 traffic). The bool->int8
    # cast is kept in the wrapper for Mosaic ref robustness; compare is in-kernel.
    if attn_mask.dtype == jnp.int8:
        mask = attn_mask
    elif attn_mask.dtype == jnp.bool_:
        mask = attn_mask.astype(jnp.int8)
    else:
        mask = (attn_mask != 0).astype(jnp.int8)

    alpha = float(_LOG2E / float(D) ** 0.5)   # scale * log2(e), folded into Q
    out_dtype = Q.dtype
    isz = Q.dtype.itemsize
    budget = _vmem_budget_bytes()

    if return_attn:
        if q_tile is not None:
            Tq = q_tile
        else:
            cands = _tile_candidates(Lq, (512, 256, 128, 64, 32, 16, 8))
            Tq = cands[-1]
            for t in cands:
                if _attn_path_vmem(t, Lk, D, isz, isz) <= budget:
                    Tq = t
                    break
        assert Lq % Tq == 0, "q_tile must divide Lq"
        nq = Lq // Tq
        need = _attn_path_vmem(Tq, Lk, D, isz, isz)

        grid_spec = pltpu.PrefetchScalarGridSpec(
            num_scalar_prefetch=0,
            grid=(B, H, nq),
            in_specs=[
                pl.BlockSpec((1, 1, Tq, D), lambda b, h, qi: (b, h, qi, 0)),
                pl.BlockSpec((1, 1, Lk, D), lambda b, h, qi: (b, h, 0, 0)),
                pl.BlockSpec((1, 1, Lk, D), lambda b, h, qi: (b, h, 0, 0)),
                pl.BlockSpec((1, 1, Tq, Lk), lambda b, h, qi: (b, h, qi, 0)),
            ],
            out_specs=[
                pl.BlockSpec((1, 1, Tq, D), lambda b, h, qi: (b, h, qi, 0)),
                pl.BlockSpec((1, 1, Tq, Lk), lambda b, h, qi: (b, h, qi, 0)),
            ],
        )
        context, attn = pl.pallas_call(
            functools.partial(_sdpa_kernel_with_attn, alpha=alpha),
            out_shape=(
                jax.ShapeDtypeStruct((B, H, Lq, D), out_dtype),
                jax.ShapeDtypeStruct((B, H, Lq, Lk), out_dtype),
            ),
            grid_spec=grid_spec,
            compiler_params=pltpu.CompilerParams(
                dimension_semantics=("parallel", "parallel", "parallel"),
                vmem_limit_bytes=_vmem_limit(need, budget),
            ),
        )(Q, K, V, mask)
        return context, attn

    # --- flash-attention path: context only, online softmax over kv tiles ---
    tq_cands = [q_tile] if q_tile is not None else \
        _tile_candidates(Lq, (512, 256, 128, 64, 32, 16, 8))
    # mask block has Tk as its LAST dim -> multiple of 128 or full.
    tk_cands = [kv_tile] if kv_tile is not None else \
        _tile_candidates(Lk, (1024, 512, 256, 128))
    Tq, Tk = tq_cands[-1], tk_cands[-1]
    done = False
    for tq in tq_cands:            # prefer big Tq: fewer K/V re-streams
        for tk in tk_cands:
            if _flash_path_vmem(tq, tk, D, isz) <= budget:
                Tq, Tk = tq, tk
                done = True
                break
        if done:
            break
    assert Lq % Tq == 0 and Lk % Tk == 0
    nq, nk = Lq // Tq, Lk // Tk
    need = _flash_path_vmem(Tq, Tk, D, isz)

    grid_spec = pltpu.PrefetchScalarGridSpec(
        num_scalar_prefetch=0,
        grid=(B, H, nq, nk),
        in_specs=[
            pl.BlockSpec((1, 1, Tq, D), lambda b, h, qi, ki: (b, h, qi, 0)),
            pl.BlockSpec((1, 1, Tk, D), lambda b, h, qi, ki: (b, h, ki, 0)),
            pl.BlockSpec((1, 1, Tk, D), lambda b, h, qi, ki: (b, h, ki, 0)),
            pl.BlockSpec((1, 1, Tq, Tk), lambda b, h, qi, ki: (b, h, qi, ki)),
        ],
        out_specs=pl.BlockSpec((1, 1, Tq, D), lambda b, h, qi, ki: (b, h, qi, 0)),
        scratch_shapes=[
            pltpu.VMEM((Tq, 1), jnp.float32),   # running row max (exp2 domain)
            pltpu.VMEM((Tq, 1), jnp.float32),   # running denominator
            pltpu.VMEM((Tq, D), jnp.float32),   # f32 context accumulator
        ],
    )
    context = pl.pallas_call(
        functools.partial(_sdpa_flash_kernel, alpha=alpha),
        out_shape=jax.ShapeDtypeStruct((B, H, Lq, D), out_dtype),
        grid_spec=grid_spec,
        compiler_params=pltpu.CompilerParams(
            dimension_semantics=("parallel", "parallel", "parallel", "arbitrary"),
            vmem_limit_bytes=_vmem_limit(need, budget),
        ),
    )(Q, K, V, mask)
    return context


# --------------------------------------------------------------------------
# Self-test
# --------------------------------------------------------------------------

def _reference(Q, K, V, attn_mask):
    D = Q.shape[-1]
    scores = jnp.einsum("bhqd,bhkd->bhqk", Q, K) / jnp.sqrt(jnp.float32(D))
    scores = jnp.where(attn_mask, _NEG_FILL, scores)
    attn = jax.nn.softmax(scores, axis=-1)
    ctx = jnp.einsum("bhqk,bhkd->bhqd", attn, V)
    return ctx, attn


if __name__ == "__main__":
    B, H, Lq, Lk, D = 2, 4, 8, 8, 32
    key = jax.random.PRNGKey(0)
    kq, kk, kv, km = jax.random.split(key, 4)

    Q = jax.random.normal(kq, (B, H, Lq, D), dtype=jnp.float32)
    K = jax.random.normal(kk, (B, H, Lk, D), dtype=jnp.float32)
    V = jax.random.normal(kv, (B, H, Lk, D), dtype=jnp.float32)
    attn_mask = jax.random.bernoulli(km, p=0.25, shape=(B, H, Lq, Lk))

    # Module-equivalent path: returns (context, attn).
    context, attn = scaled_dot_product_attention(Q, K, V, attn_mask)
    jax.block_until_ready((context, attn))

    ctx_exp, attn_exp = _reference(Q, K, V, attn_mask)
    # Tolerances account for TPU MXU default f32 precision; interpret mode is exact.
    assert jnp.allclose(context, ctx_exp, atol=2e-2, rtol=2e-2)
    assert jnp.allclose(attn, attn_exp, atol=2e-2, rtol=2e-2)
    assert jnp.allclose(jnp.sum(attn, axis=-1), 1.0, atol=1e-3)      # rows normalized
    assert jnp.all(jnp.where(attn_mask, attn, 0.0) < 1e-6)           # masked ~ 0

    # Flash-attention path: context only (no O(Lq*Lk) HBM output).
    ctx_flash = scaled_dot_product_attention(Q, K, V, attn_mask, return_attn=False)
    jax.block_until_ready(ctx_flash)
    assert jnp.allclose(ctx_flash, ctx_exp, atol=2e-2, rtol=2e-2)

    print("KERNEL_OK")
</pallas_src>

<mosaic_0001>
module attributes {stable_mosaic.version = 11 : i64} {
  func.func @_sdpa_kernel_with_attn(%arg0: i32, %arg1: i32, %arg2: i32, %arg3: memref<1x1x8x32xf32, #tpu.memory_space<vmem>>, %arg4: memref<1x1x8x32xf32, #tpu.memory_space<vmem>>, %arg5: memref<1x1x8x32xf32, #tpu.memory_space<vmem>>, %arg6: memref<1x1x8x8xi8, #tpu.memory_space<vmem>>, %arg7: memref<1x1x8x32xf32, #tpu.memory_space<vmem>>, %arg8: memref<1x1x8x8xf32, #tpu.memory_space<vmem>>) attributes {dimension_semantics = [#tpu.dimension_semantics<parallel>, #tpu.dimension_semantics<parallel>, #tpu.dimension_semantics<parallel>], iteration_bounds = array<i64: 2, 4, 1>, scalar_prefetch = 0 : i64, scratch_operands = 0 : i64, tpu.core_type = #tpu.core_type<tc>, window_params = [{transform_indices = @transform_0, window_bounds = array<i64: 1, 1, 8, 32>}, {transform_indices = @transform_1, window_bounds = array<i64: 1, 1, 8, 32>}, {transform_indices = @transform_2, window_bounds = array<i64: 1, 1, 8, 32>}, {transform_indices = @transform_3, window_bounds = array<i64: 1, 1, 8, 8>}, {transform_indices = @transform_4, window_bounds = array<i64: 1, 1, 8, 32>}, {transform_indices = @transform_5, window_bounds = array<i64: 1, 1, 8, 8>}]} {
    %c0 = arith.constant 0 : index
    %c0_0 = arith.constant 0 : index
    %c0_1 = arith.constant 0 : index
    %c0_2 = arith.constant 0 : index
    %0 = vector.load %arg3[%c0, %c0_0, %c0_1, %c0_2] : memref<1x1x8x32xf32, #tpu.memory_space<vmem>>, vector<1x1x8x32xf32>
    %1 = vector.shape_cast %0 : vector<1x1x8x32xf32> to vector<8x32xf32>
    %cst = arith.constant 0.255034864 : f32
    %2 = vector.broadcast %cst : f32 to vector<8x32xf32>
    %3 = arith.mulf %1, %2 : vector<8x32xf32>
    %c0_3 = arith.constant 0 : index
    %c0_4 = arith.constant 0 : index
    %c0_5 = arith.constant 0 : index
    %c0_6 = arith.constant 0 : index
    %4 = vector.load %arg4[%c0_3, %c0_4, %c0_5, %c0_6] : memref<1x1x8x32xf32, #tpu.memory_space<vmem>>, vector<1x1x8x32xf32>
    %5 = vector.shape_cast %4 : vector<1x1x8x32xf32> to vector<8x32xf32>
    %c0_7 = arith.constant 0 : index
    %c0_8 = arith.constant 0 : index
    %c0_9 = arith.constant 0 : index
    %c0_10 = arith.constant 0 : index
    %6 = vector.load %arg5[%c0_7, %c0_8, %c0_9, %c0_10] : memref<1x1x8x32xf32, #tpu.memory_space<vmem>>, vector<1x1x8x32xf32>
    %7 = vector.shape_cast %6 : vector<1x1x8x32xf32> to vector<8x32xf32>
    %c0_11 = arith.constant 0 : index
    %c0_12 = arith.constant 0 : index
    %c0_13 = arith.constant 0 : index
    %c0_14 = arith.constant 0 : index
    %8 = vector.load %arg6[%c0_11, %c0_12, %c0_13, %c0_14] : memref<1x1x8x8xi8, #tpu.memory_space<vmem>>, vector<1x1x8x8xi8>
    %9 = vector.shape_cast %8 : vector<1x1x8x8xi8> to vector<8x8xi8>
    %cst_15 = arith.constant dense<0.000000e+00> : vector<8x8xf32>
    %10 = tpu.matmul %3, %5, %cst_15 {dimension_numbers = #tpu.dot_dimension_numbers<[1], [1], [0], [0], [0, 0, 1, 0], [], []>} : vector<8x32xf32>, vector<8x32xf32>, vector<8x8xf32> -> vector<8x8xf32>
    %c0_i8 = arith.constant 0 : i8
    %11 = vector.broadcast %c0_i8 : i8 to vector<8x8xi8>
    %12 = arith.cmpi ne, %9, %11 : vector<8x8xi8>
    %cst_16 = arith.constant -1.44269504E+9 : f32
    %13 = vector.broadcast %cst_16 : f32 to vector<8x8xf32>
    %14 = arith.select %12, %13, %10 : vector<8x8xi1>, vector<8x8xf32>
    %cst_17 = arith.constant dense<0xFF800000> : vector<8xf32>
    %15 = vector.multi_reduction <maximumf>, %14, %cst_17 [1] : vector<8x8xf32> to vector<8xf32>
    %16 = vector.shape_cast %15 : vector<8xf32> to vector<8x1xf32>
    %17 = vector.broadcast %16 : vector<8x1xf32> to vector<8x8xf32>
    %18 = arith.subf %14, %17 : vector<8x8xf32>
    %19 = math.exp2 %18 : vector<8x8xf32>
    %cst_18 = arith.constant dense<0.000000e+00> : vector<8xf32>
    %20 = vector.multi_reduction <add>, %19, %cst_18 [1] : vector<8x8xf32> to vector<8xf32>
    %21 = vector.shape_cast %20 : vector<8xf32> to vector<8x1xf32>
    %22 = tpu.reciprocal %21 {approx = true} : vector<8x1xf32> -> vector<8x1xf32>
    %23 = arith.mulf %21, %22 : vector<8x1xf32>
    %cst_19 = arith.constant 2.000000e+00 : f32
    %24 = vector.broadcast %cst_19 : f32 to vector<8x1xf32>
    %25 = arith.subf %24, %23 : vector<8x1xf32>
    %26 = arith.mulf %22, %25 : vector<8x1xf32>
    %27 = vector.broadcast %26 : vector<8x1xf32> to vector<8x8xf32>
    %28 = arith.mulf %19, %27 : vector<8x8xf32>
    %cst_20 = arith.constant dense<0.000000e+00> : vector<8x32xf32>
    %29 = tpu.matmul %28, %7, %cst_20 {dimension_numbers = #tpu.dot_dimension_numbers<[1], [0], [0], [1], [0, 0, 1, 1], [], []>} : vector<8x8xf32>, vector<8x32xf32>, vector<8x32xf32> -> vector<8x32xf32>
    %c0_21 = arith.constant 0 : index
    %c0_22 = arith.constant 0 : index
    %c0_23 = arith.constant 0 : index
    %c0_24 = arith.constant 0 : index
    %30 = vector.load %arg8[%c0_21, %c0_22, %c0_23, %c0_24] : memref<1x1x8x8xf32, #tpu.memory_space<vmem>>, vector<1x1x8x8xf32>
    %31 = vector.shape_cast %30 : vector<1x1x8x8xf32> to vector<8x8xf32>
    %32 = vector.shape_cast %28 : vector<8x8xf32> to vector<1x1x8x8xf32>
    tpu.vector_store %arg8[%c0_21, %c0_22, %c0_23, %c0_24], %32 {strides = array<i32>} : memref<1x1x8x8xf32, #tpu.memory_space<vmem>>, vector<1x1x8x8xf32>,
    %c0_25 = arith.constant 0 : index
    %c0_26 = arith.constant 0 : index
    %c0_27 = arith.constant 0 : index
    %c0_28 = arith.constant 0 : index
    %33 = vector.load %arg7[%c0_25, %c0_26, %c0_27, %c0_28] : memref<1x1x8x32xf32, #tpu.memory_space<vmem>>, vector<1x1x8x32xf32>
    %34 = vector.shape_cast %33 : vector<1x1x8x32xf32> to vector<8x32xf32>
    %35 = vector.shape_cast %29 : vector<8x32xf32> to vector<1x1x8x32xf32>
    tpu.vector_store %arg7[%c0_25, %c0_26, %c0_27, %c0_28], %35 {strides = array<i32>} : memref<1x1x8x32xf32, #tpu.memory_space<vmem>>, vector<1x1x8x32xf32>,
    return
  }
  func.func @transform_0(%arg0: i32, %arg1: i32, %arg2: i32) -> (i32, i32, i32, i32) {
    %c0_i32 = arith.constant 0 : i32
    %c0_i32_0 = arith.constant 0 : i32
    return %arg0, %arg1, %arg2, %c0_i32 : i32, i32, i32, i32
  }
  func.func @transform_1(%arg0: i32, %arg1: i32, %arg2: i32) -> (i32, i32, i32, i32) {
    %c0_i32 = arith.constant 0 : i32
    %c0_i32_0 = arith.constant 0 : i32
    %c0_i32_1 = arith.constant 0 : i32
    return %arg0, %arg1, %c0_i32, %c0_i32_0 : i32, i32, i32, i32
  }
  func.func @transform_2(%arg0: i32, %arg1: i32, %arg2: i32) -> (i32, i32, i32, i32) {
    %c0_i32 = arith.constant 0 : i32
    %c0_i32_0 = arith.constant 0 : i32
    %c0_i32_1 = arith.constant 0 : i32
    return %arg0, %arg1, %c0_i32, %c0_i32_0 : i32, i32, i32, i32
  }
  func.func @transform_3(%arg0: i32, %arg1: i32, %arg2: i32) -> (i32, i32, i32, i32) {
    %c0_i32 = arith.constant 0 : i32
    %c0_i32_0 = arith.constant 0 : i32
    return %arg0, %arg1, %arg2, %c0_i32 : i32, i32, i32, i32
  }
  func.func @transform_4(%arg0: i32, %arg1: i32, %arg2: i32) -> (i32, i32, i32, i32) {
    %c0_i32 = arith.constant 0 : i32
    %c0_i32_0 = arith.constant 0 : i32
    return %arg0, %arg1, %arg2, %c0_i32 : i32, i32, i32, i32
  }
  func.func @transform_5(%arg0: i32, %arg1: i32, %arg2: i32) -> (i32, i32, i32, i32) {
    %c0_i32 = arith.constant 0 : i32
    %c0_i32_0 = arith.constant 0 : i32
    return %arg0, %arg1, %arg2, %c0_i32 : i32, i32, i32, i32
  }
}

</mosaic_0001>

<llo_original>
// kernel: tpu_custom_call.1
$region0: #{tpu_custom_call.1}
  #allocation0 [shape = 'u32[]', space=smem, size = 0x4, offset = 0x4, fixed_abs, tag = 'smem constant byte address 0x4 - core index']
  #allocation1 [shape = 'u32[72,128]{1,0:T(1,128)}', space=vmem, size = 0x9000, scoped, tag = 'internal scratch']
  %s0 = inlined_call_operand.hbm [shape: f32[2,4,8,32], index: 0, kind: input, shape index: {}]
  %s1 = inlined_call_operand.hbm [shape: f32[2,4,8,32], index: 1, kind: input, shape index: {}]
  %s2 = inlined_call_operand.hbm [shape: f32[2,4,8,32], index: 2, kind: input, shape index: {}]
  %s3 = inlined_call_operand.hbm [shape: s8[2,4,8,8], index: 3, kind: input, shape index: {}]
  %s4 = inlined_call_operand.hbm [shape: f32[2,4,8,32], index: 4, kind: output, shape index: {0}]
  %s5 = inlined_call_operand.hbm [shape: f32[2,4,8,8], index: 5, kind: output, shape index: {1}]
  %6 = xla_tuple %s4, %s5
  %s7 = sld [smem:[#allocation0]]
  $region73: #{tpu_custom_call.1} parent=0
    _
  %s9 = ssub.s32 1, %s7
  %s10 = scalar_select 0, %s9, %s7
  $region1: #{tpu_custom_call.1} parent=0
    #allocation2 [shape = 'u8[8192]{0}', space=vmem, size = 0x2000, scoped, tag = 'input window, operand 0']
    #allocation3 [shape = 's32[2]{0}', space=sflag, size = 0x8, scoped, tag = 'scoped memory for tpu_custom_call.1']
    #allocation4 [shape = 's32[2]{0}', space=sflag, size = 0x8, scoped, tag = 'scoped memory for tpu_custom_call.1']
    #allocation5 [shape = 'u8[8192]{0}', space=vmem, size = 0x2000, scoped, tag = 'input window, operand 1']
    #allocation6 [shape = 's32[2]{0}', space=sflag, size = 0x8, scoped, tag = 'scoped memory for tpu_custom_call.1']
    #allocation7 [shape = 'u8[8192]{0}', space=vmem, size = 0x2000, scoped, tag = 'input window, operand 2']
    #allocation8 [shape = 'u8[2048]{0}', space=vmem, size = 0x800, scoped, tag = 'input window, operand 3']
    #allocation9 [shape = 's32[2]{0}', space=sflag, size = 0x8, scoped, tag = 'scoped memory for tpu_custom_call.1']
    #allocation10 [shape = 'u8[8192]{0}', space=vmem, size = 0x2000, scoped, tag = 'output window, operand 0']
    #allocation11 [shape = 'u8[8192]{0}', space=vmem, size = 0x2000, scoped, tag = 'output window, operand 1']
    #allocation12 [shape = 's32[2]{0}', space=sflag, size = 0x8, scoped, tag = 'scoped memory for tpu_custom_call.1']
    %11 = vsyncpa [#allocation3], 0
    %s12 = scalar_lea.sflag [#allocation3], 1
    %13 = vsyncpa %s12, 0
    %14 = vsyncpa [#allocation6], 0
    %s15 = scalar_lea.sflag [#allocation6], 1
    %16 = vsyncpa %s15, 0
    %17 = vsyncpa [#allocation9], 0
    %s18 = scalar_lea.sflag [#allocation9], 1
    %19 = vsyncpa %s18, 0
    %20 = vsyncpa [#allocation4], 0
    %s21 = scalar_lea.sflag [#allocation4], 1
    %22 = vsyncpa %s21, 0
    %23 = vsyncpa [#allocation12], 0
    %s24 = scalar_lea.sflag [#allocation12], 1
    %25 = vsyncpa %s24, 0
    loop: start=0, step=1, limit=10
    $region2: #{tpu_custom_call.1} parent=1 // loop_pre_header
      _
    $region3: #{tpu_custom_call.1} parent=1 // loop_header
      %s27 = sphi 0, %s31
      %p28 = scmp.ge.s32.totalorder %s27, 10
      %s34 = sphi 0, %s53
      %s35 = sphi 0, %s49
      %s36 = sphi 0, %s45
      %s37 = sphi 0, %s34
      %s38 = sphi 0, %s35
      %s39 = sphi 0, %s36
      %s40 = sphi 0, %s37
      %s41 = sphi 0, %s38
      %s42 = sphi 0, %s39
      %s60 = sphi 0, %s62
      %s63 = sphi 0, %s60
      %s64 = sphi 0, %s63
      %s80 = sphi 0, %s64
      %s88 = sphi 0, %s90
      %s91 = sphi 0, %s88
      %s92 = sphi 0, %s91
      %s108 = sphi 0, %s92
      %s116 = sphi 0, %s118
      %s119 = sphi 0, %s116
      %s120 = sphi 0, %s119
      %s136 = sphi 0, %s120
      %s146 = sphi 0, %s148
      %s149 = sphi 0, %s146
      %s150 = sphi 0, %s149
      %s166 = sphi 0, %s150
      %s176 = sphi 0, %s178
      %s179 = sphi 0, %s176
      %s180 = sphi 0, %s179
      %s196 = sphi 0, %s180
      %s206 = sphi 0, %s208
      %s209 = sphi 0, %s206
      %s210 = sphi 0, %s209
      %s226 = sphi 0, %s210
    $region4: #{tpu_custom_call.1} parent=1 // loop_header_branch
      %30 = sbr.rel (%p28) target = $region8
    $region5: #{tpu_custom_call.1} parent=1 // loop_body
      %s32 = ssub.s32 %s27, 1
      %s33 = ssub.s32 %s27, 2
      %s43 = sadd.s32 1, %s36
      %p44 = scmp.ge.s32.totalorder %s43, 1
      %s45 = scalar_select %p44, 0, %s43
      %s46 = sadd.s32 1, %s35
      %s47 = scalar_select %p44, %s46, %s35
      %p48 = scmp.ge.s32.totalorder %s47, 4
      %s49 = scalar_select %p48, 0, %s47
      %s50 = sadd.s32 1, %s34
      %s51 = scalar_select %p48, %s50, %s34
      %p52 = scmp.ge.s32.totalorder %s51, 2
      %s53 = scalar_select %p52, 0, %s51
      %s54 = ssub.s32 %s34, %s53
      %s55 = ssub.s32 %s35, %s49
      %s56 = sor.u32 %s54, %s55
      %s57 = ssub.s32 %s36, %s45
      %s58 = sor.u32 %s56, %s57
      %p59 = scmp.eq.s32.totalorder %s58, 0
      %s61 = sadd.s32 %s60, 1
      %s62 = scalar_select %p59, %s60, %s61
      %p65 = pneg %p59
      %p66 = scmp.eq.s32.totalorder %s27, 7
      %p67 = por %p65, %p66
      %p68 = scmp.ne.s32.totalorder %s60, %s63
      %p69 = scmp.eq.s32.totalorder %s27, 0
      %p70 = por %p68, %p69
      %p71 = scmp.ne.s32.totalorder %s60, %s63
      %p72 = scmp.eq.s32.totalorder %s32, 7
      %p73 = por %p71, %p72
      %p74 = scmp.ne.s32.totalorder %s63, %s64
      %p75 = scmp.eq.s32.totalorder %s32, 0
      %p76 = por %p74, %p75
      %p77 = scmp.ne.s32.totalorder %s63, %s64
      %p78 = scmp.eq.s32.totalorder %s33, 7
      %p79 = por %p77, %p78
      %p81 = scmp.ne.s32.totalorder %s64, %s80
      %p82 = scmp.eq.s32.totalorder %s33, 0
      %p83 = por %p81, %p82
      %s84 = ssub.s32 %s34, %s53
      %s85 = ssub.s32 %s35, %s49
      %s86 = sor.u32 %s84, %s85
      %p87 = scmp.eq.s32.totalorder %s86, 0
      %s89 = sadd.s32 %s88, 1
      %s90 = scalar_select %p87, %s88, %s89
      %p93 = pneg %p87
      %p94 = scmp.eq.s32.totalorder %s27, 7
      %p95 = por %p93, %p94
      %p96 = scmp.ne.s32.totalorder %s88, %s91
      %p97 = scmp.eq.s32.totalorder %s27, 0
      %p98 = por %p96, %p97
      %p99 = scmp.ne.s32.totalorder %s88, %s91
      %p100 = scmp.eq.s32.totalorder %s32, 7
      %p101 = por %p99, %p100
      %p102 = scmp.ne.s32.totalorder %s91, %s92
      %p103 = scmp.eq.s32.totalorder %s32, 0
      %p104 = por %p102, %p103
      %p105 = scmp.ne.s32.totalorder %s91, %s92
      %p106 = scmp.eq.s32.totalorder %s33, 7
      %p107 = por %p105, %p106
      %p109 = scmp.ne.s32.totalorder %s92, %s108
      %p110 = scmp.eq.s32.totalorder %s33, 0
      %p111 = por %p109, %p110
      %s112 = ssub.s32 %s34, %s53
      %s113 = ssub.s32 %s35, %s49
      %s114 = sor.u32 %s112, %s113
      %p115 = scmp.eq.s32.totalorder %s114, 0
      %s117 = sadd.s32 %s116, 1
      %s118 = scalar_select %p115, %s116, %s117
      %p121 = pneg %p115
      %p122 = scmp.eq.s32.totalorder %s27, 7
      %p123 = por %p121, %p122
      %p124 = scmp.ne.s32.totalorder %s116, %s119
      %p125 = scmp.eq.s32.totalorder %s27, 0
      %p126 = por %p124, %p125
      %p127 = scmp.ne.s32.totalorder %s116, %s119
      %p128 = scmp.eq.s32.totalorder %s32, 7
      %p129 = por %p127, %p128
      %p130 = scmp.ne.s32.totalorder %s119, %s120
      %p131 = scmp.eq.s32.totalorder %s32, 0
      %p132 = por %p130, %p131
      %p133 = scmp.ne.s32.totalorder %s119, %s120
      %p134 = scmp.eq.s32.totalorder %s33, 7
      %p135 = por %p133, %p134
      %p137 = scmp.ne.s32.totalorder %s120, %s136
      %p138 = scmp.eq.s32.totalorder %s33, 0
      %p139 = por %p137, %p138
      %s140 = ssub.s32 %s34, %s53
      %s141 = ssub.s32 %s35, %s49
      %s142 = sor.u32 %s140, %s141
      %s143 = ssub.s32 %s36, %s45
      %s144 = sor.u32 %s142, %s143
      %p145 = scmp.eq.s32.totalorder %s144, 0
      %s147 = sadd.s32 %s146, 1
      %s148 = scalar_select %p145, %s146, %s147
      %p151 = pneg %p145
      %p152 = scmp.eq.s32.totalorder %s27, 7
      %p153 = por %p151, %p152
      %p154 = scmp.ne.s32.totalorder %s146, %s149
      %p155 = scmp.eq.s32.totalorder %s27, 0
      %p156 = por %p154, %p155
      %p157 = scmp.ne.s32.totalorder %s146, %s149
      %p158 = scmp.eq.s32.totalorder %s32, 7
      %p159 = por %p157, %p158
      %p160 = scmp.ne.s32.totalorder %s149, %s150
      %p161 = scmp.eq.s32.totalorder %s32, 0
      %p162 = por %p160, %p161
      %p163 = scmp.ne.s32.totalorder %s149, %s150
      %p164 = scmp.eq.s32.totalorder %s33, 7
      %p165 = por %p163, %p164
      %p167 = scmp.ne.s32.totalorder %s150, %s166
      %p168 = scmp.eq.s32.totalorder %s33, 0
      %p169 = por %p167, %p168
      %s170 = ssub.s32 %s34, %s53
      %s171 = ssub.s32 %s35, %s49
      %s172 = sor.u32 %s170, %s171
      %s173 = ssub.s32 %s36, %s45
      %s174 = sor.u32 %s172, %s173
      %p175 = scmp.eq.s32.totalorder %s174, 0
      %s177 = sadd.s32 %s176, 1
      %s178 = scalar_select %p175, %s176, %s177
      %p181 = pneg %p175
      %p182 = scmp.eq.s32.totalorder %s27, 7
      %p183 = por %p181, %p182
      %p184 = scmp.ne.s32.totalorder %s176, %s179
      %p185 = scmp.eq.s32.totalorder %s27, 0
      %p186 = por %p184, %p185
      %p187 = scmp.ne.s32.totalorder %s176, %s179
      %p188 = scmp.eq.s32.totalorder %s32, 7
      %p189 = por %p187, %p188
      %p190 = scmp.ne.s32.totalorder %s179, %s180
      %p191 = scmp.eq.s32.totalorder %s32, 0
      %p192 = por %p190, %p191
      %p193 = scmp.ne.s32.totalorder %s179, %s180
      %p194 = scmp.eq.s32.totalorder %s33, 7
      %p195 = por %p193, %p194
      %p197 = scmp.ne.s32.totalorder %s180, %s196
      %p198 = scmp.eq.s32.totalorder %s33, 0
      %p199 = por %p197, %p198
      %s200 = ssub.s32 %s34, %s53
      %s201 = ssub.s32 %s35, %s49
      %s202 = sor.u32 %s200, %s201
      %s203 = ssub.s32 %s36, %s45
      %s204 = sor.u32 %s202, %s203
      %p205 = scmp.eq.s32.totalorder %s204, 0
      %s207 = sadd.s32 %s206, 1
      %s208 = scalar_select %p205, %s206, %s207
      %p211 = pneg %p205
      %p212 = scmp.eq.s32.totalorder %s27, 7
      %p213 = por %p211, %p212
      %p214 = scmp.ne.s32.totalorder %s206, %s209
      %p215 = scmp.eq.s32.totalorder %s27, 0
      %p216 = por %p214, %p215
      %p217 = scmp.ne.s32.totalorder %s206, %s209
      %p218 = scmp.eq.s32.totalorder %s32, 7
      %p219 = por %p217, %p218
      %p220 = scmp.ne.s32.totalorder %s209, %s210
      %p221 = scmp.eq.s32.totalorder %s32, 0
      %p222 = por %p220, %p221
      %p223 = scmp.ne.s32.totalorder %s209, %s210
      %p224 = scmp.eq.s32.totalorder %s33, 7
      %p225 = por %p223, %p224
      %p227 = scmp.ne.s32.totalorder %s210, %s226
      %p228 = scmp.eq.s32.totalorder %s33, 0
      %p229 = por %p227, %p228
      %p230 = scmp.le.s32.totalorder 1, %s27
      %p231 = scmp.lt.s32.totalorder %s27, 9
      %p232 = pnand %p230, %p231
      %p233 = pneg %p232
      // Predicated region
      $region9: #{tpu_custom_call.1} parent=5 // pred_check
        _
      $region10: #{tpu_custom_call.1} parent=5 // pred_check_branch
        %235 = sbr.rel (%p232) target = $region12
      $region11: #{tpu_custom_call.1} parent=5 // pred_region
        %s236 = ssub.s32 %s27, 1
      $region12: #{tpu_custom_call.1} parent=5 // pred_fallthru
        _
      %p237 = scmp.lt.s32.totalorder %s27, 8
      // Predicated region
      $region13: #{tpu_custom_call.1} parent=5 // pred_check
        %p238 = pneg %p237
      $region14: #{tpu_custom_call.1} parent=5 // pred_check_branch
        %240 = sbr.rel (%p238) target = $region16
      $region15: #{tpu_custom_call.1} parent=5 // pred_region
        // Predicated region
        $region17: #{tpu_custom_call.1} parent=15 // pred_check
          %p241 = pneg %p70
        $region18: #{tpu_custom_call.1} parent=15 // pred_check_branch
          %243 = sbr.rel (%p241) target = $region20
        $region19: #{tpu_custom_call.1} parent=15 // pred_region
          %s244 = sand.u32 %s60, 1
          %s245 = scalar_lea.sflag [#allocation3], %s244
          %s246 = sand.u32 %s60, 1
          %s247 = smul.addr %s246, 8
          %s248 = scalar_lea.vmem [#allocation2], %s247
          %250 = vsyncadd %s245, 0
          %s251 = sadd.s32 %s36, %s35
          %s252 = smul.addr %s34, 4
          %s253 = sadd.s32 %s251, %s252
          %s254 = smul.addr %s253, 8
          %s255 = scalar_lea.hbm %s0, %s254
          %s257 = sshll.u32 %s255, 4
          %s258 = int_to_ptr.hbm [resolvable:$true] %s257
          %s259 = sshll.u32 %s248, 4
          %s260 = int_to_ptr.vmem [resolvable:$true] %s259
          %262 = dma.hbm_to_vmem [thread:$0]  %s258, 128, %s260, %s245
        $region20: #{tpu_custom_call.1} parent=15 // pred_fallthru
          _
        // Predicated region
        $region21: #{tpu_custom_call.1} parent=15 // pred_check
          %p263 = pneg %p98
        $region22: #{tpu_custom_call.1} parent=15 // pred_check_branch
          %265 = sbr.rel (%p263) target = $region24
        $region23: #{tpu_custom_call.1} parent=15 // pred_region
          %s266 = sand.u32 %s27, 1
          %s267 = scalar_lea.sflag [#allocation6], %s266
          %s268 = sand.u32 %s88, 1
          %s269 = smul.addr %s268, 8
          %s270 = scalar_lea.vmem [#allocation5], %s269
          %272 = vsyncadd %s267, 0
          %s273 = smul.addr %s34, 4
          %s274 = sadd.s32 %s35, %s273
          %s275 = smul.addr %s274, 8
          %s276 = scalar_lea.hbm %s1, %s275
          %s278 = sshll.u32 %s276, 4
          %s279 = int_to_ptr.hbm [resolvable:$true] %s278
          %s280 = sshll.u32 %s270, 4
          %s281 = int_to_ptr.vmem [resolvable:$true] %s280
          %283 = dma.hbm_to_vmem [thread:$0]  %s279, 128, %s281, %s267
        $region24: #{tpu_custom_call.1} parent=15 // pred_fallthru
          _
        // Predicated region
        $region25: #{tpu_custom_call.1} parent=15 // pred_check
          %p284 = pneg %p126
        $region26: #{tpu_custom_call.1} parent=15 // pred_check_branch
          %286 = sbr.rel (%p284) target = $region28
        $region27: #{tpu_custom_call.1} parent=15 // pred_region
          %s287 = sand.u32 %s27, 1
          %s288 = scalar_lea.sflag [#allocation6], %s287
          %s289 = sand.u32 %s116, 1
          %s290 = smul.addr %s289, 8
          %s291 = scalar_lea.vmem [#allocation7], %s290
          %293 = vsyncadd %s288, 0
          %s294 = smul.addr %s34, 4
          %s295 = sadd.s32 %s35, %s294
          %s296 = smul.addr %s295, 8
          %s297 = scalar_lea.hbm %s2, %s296
          %s299 = sshll.u32 %s297, 4
          %s300 = int_to_ptr.hbm [resolvable:$true] %s299
          %s301 = sshll.u32 %s291, 4
          %s302 = int_to_ptr.vmem [resolvable:$true] %s301
          %304 = dma.hbm_to_vmem [thread:$0]  %s300, 128, %s302, %s288
        $region28: #{tpu_custom_call.1} parent=15 // pred_fallthru
          _
        // Predicated region
        $region29: #{tpu_custom_call.1} parent=15 // pred_check
          %p305 = pneg %p156
        $region30: #{tpu_custom_call.1} parent=15 // pred_check_branch
          %307 = sbr.rel (%p305) target = $region32
        $region31: #{tpu_custom_call.1} parent=15 // pred_region
          %s308 = sand.u32 %s146, 1
          %s309 = scalar_lea.sflag [#allocation9], %s308
          %s310 = sand.u32 %s146, 1
          %s311 = smul.addr %s310, 2
          %s312 = scalar_lea.vmem [#allocation8], %s311
          %314 = vsyncadd %s309, 0
          %s315 = sadd.s32 %s36, %s35
          %s316 = smul.addr %s34, 4
          %s317 = sadd.s32 %s315, %s316
          %s318 = smul.addr %s317, 2
          %s319 = scalar_lea.hbm %s3, %s318
          %s321 = sshll.u32 %s319, 4
          %s322 = int_to_ptr.hbm [resolvable:$true] %s321
          %s323 = sshll.u32 %s312, 4
          %s324 = int_to_ptr.vmem [resolvable:$true] %s323
          %326 = dma.hbm_to_vmem [thread:$0]  %s322, 32, %s324, %s309
        $region32: #{tpu_custom_call.1} parent=15 // pred_fallthru
          _
      $region16: #{tpu_custom_call.1} parent=5 // pred_fallthru
        _
      %p327 = scmp.le.s32.totalorder 1, %s27
      %p328 = scmp.lt.s32.totalorder %s27, 9
      %p329 = pnand %p327, %p328
      %p330 = pneg %p329
      // Predicated region
      $region33: #{tpu_custom_call.1} parent=5 // pred_check
        _
      $region34: #{tpu_custom_call.1} parent=5 // pred_check_branch
        %332 = sbr.rel (%p329) target = $region36
      $region35: #{tpu_custom_call.1} parent=5 // pred_region
        %s333 = ssub.s32 %s27, 1
        %s334 = sand.u32 %s63, 1
        %s335 = scalar_lea.sflag [#allocation3], %s334
        %s336 = sand.u32 %s63, 1
        %s337 = smul.addr %s336, 8
        %s338 = scalar_lea.vmem [#allocation2], %s337
        // Predicated region
        $region37: #{tpu_custom_call.1} parent=35 // pred_check
          %p339 = pneg %p76
        $region38: #{tpu_custom_call.1} parent=35 // pred_check_branch
          %341 = sbr.rel (%p339) target = $region40
        $region39: #{tpu_custom_call.1} parent=35 // pred_region
          %343 = dma.done %s335, 128
        $region40: #{tpu_custom_call.1} parent=35 // pred_fallthru
          _
        %s344 = sand.u32 %s32, 1
        %s345 = scalar_lea.sflag [#allocation6], %s344
        %s346 = sand.u32 %s91, 1
        %s347 = smul.addr %s346, 8
        %s348 = scalar_lea.vmem [#allocation5], %s347
        // Predicated region
        $region41: #{tpu_custom_call.1} parent=35 // pred_check
          %p349 = pneg %p104
        $region42: #{tpu_custom_call.1} parent=35 // pred_check_branch
          %351 = sbr.rel (%p349) target = $region44
        $region43: #{tpu_custom_call.1} parent=35 // pred_region
          %353 = dma.done %s345, 128
        $region44: #{tpu_custom_call.1} parent=35 // pred_fallthru
          _
        %s354 = sand.u32 %s32, 1
        %s355 = scalar_lea.sflag [#allocation6], %s354
        %s356 = sand.u32 %s119, 1
        %s357 = smul.addr %s356, 8
        %s358 = scalar_lea.vmem [#allocation7], %s357
        // Predicated region
        $region45: #{tpu_custom_call.1} parent=35 // pred_check
          %p359 = pneg %p132
        $region46: #{tpu_custom_call.1} parent=35 // pred_check_branch
          %361 = sbr.rel (%p359) target = $region48
        $region47: #{tpu_custom_call.1} parent=35 // pred_region
          %363 = dma.done %s355, 128
        $region48: #{tpu_custom_call.1} parent=35 // pred_fallthru
          _
        %s364 = sand.u32 %s149, 1
        %s365 = scalar_lea.sflag [#allocation9], %s364
        %s366 = sand.u32 %s149, 1
        %s367 = smul.addr %s366, 2
        %s368 = scalar_lea.vmem [#allocation8], %s367
        // Predicated region
        $region49: #{tpu_custom_call.1} parent=35 // pred_check
          %p369 = pneg %p162
        $region50: #{tpu_custom_call.1} parent=35 // pred_check_branch
          %371 = sbr.rel (%p369) target = $region52
        $region51: #{tpu_custom_call.1} parent=35 // pred_region
          %373 = dma.done %s365, 32
        $region52: #{tpu_custom_call.1} parent=35 // pred_fallthru
          _
        %s374 = sand.u32 %s63, 1
        %s375 = scalar_lea.sflag [#allocation3], %s374
        %s376 = sand.u32 %s63, 1
        %s377 = smul.addr %s376, 8
        %s378 = scalar_lea.vmem [#allocation2], %s377
        %p379 = pneg %p76
        %p380 = pneg %p73
        %s381 = sand.u32 %s32, 1
        %s382 = scalar_lea.sflag [#allocation6], %s381
        %s383 = sand.u32 %s91, 1
        %s384 = smul.addr %s383, 8
        %s385 = scalar_lea.vmem [#allocation5], %s384
        %p386 = pneg %p104
        %p387 = pneg %p101
        %s388 = sand.u32 %s32, 1
        %s389 = scalar_lea.sflag [#allocation6], %s388
        %s390 = sand.u32 %s119, 1
        %s391 = smul.addr %s390, 8
        %s392 = scalar_lea.vmem [#allocation7], %s391
        %p393 = pneg %p132
        %p394 = pneg %p129
        %s395 = sand.u32 %s149, 1
        %s396 = scalar_lea.sflag [#allocation9], %s395
        %s397 = sand.u32 %s149, 1
        %s398 = smul.addr %s397, 2
        %s399 = scalar_lea.vmem [#allocation8], %s398
        %p400 = pneg %p162
        %p401 = pneg %p159
        %p402 = pneg %p192
        %p403 = pneg %p189
        %s404 = sand.u32 %s179, 1
        %s405 = scalar_lea.sflag [#allocation4], %s404
        %s406 = sand.u32 %s179, 1
        %s407 = smul.addr %s406, 8
        %s408 = scalar_lea.vmem [#allocation10], %s407
        %p409 = pneg %p222
        %p410 = pneg %p219
        %s411 = sand.u32 %s209, 1
        %s412 = scalar_lea.sflag [#allocation12], %s411
        %s413 = sand.u32 %s209, 1
        %s414 = smul.addr %s413, 8
        %s415 = scalar_lea.vmem [#allocation11], %s414
        %v418 = vld [vmem:[%s338] sm:$0xff]
        %v419 = vmul.f32 %v418, 0.25503486
        %v420 = vld [vmem:[%s348] sm:$0xff]
        %v421 = vld [vmem:[%s358] sm:$0xff]
        %v422 = vld [vmem:[%s368] sm:$0x3]
        %vm423 = vcmask 261120
        %v425 = vsel %vm423, %v419, 0
        %v428 = vsel %vm423, %v420, 0
        %430 = vmatpush.xpose.msra.mxu0 0.0
        %431 = vmatpush.xpose.msra.mxu0 0.0
        %432 = vmatpush.xpose.msra.mxu0 0.0
        %433 = vmatpush.xpose.msra.mxu0 0.0
        %434 = vmatpush.xpose.msra.mxu0 0.0
        %435 = vmatpush.xpose.msra.mxu0 0.0
        %436 = vmatpush.xpose.msra.mxu0 0.0
        %437 = vmatpush.xpose.msra.mxu0 0.0
        %438 = vmatpush.xpose.msra.mxu0 0.0
        %439 = vmatpush.xpose.msra.mxu0 0.0
        %440 = vmatpush.xpose.msra.mxu0 0.0
        %441 = vmatpush.xpose.msra.mxu0 0.0
        %442 = vmatpush.xpose.msra.mxu0 0.0
        %443 = vmatpush.xpose.msra.mxu0 0.0
        %444 = vmatpush.xpose.msra.mxu0 0.0
        %445 = vmatpush.xpose.msra.mxu0 %v428
        %446 = vmatmul.f32.gmra.mxu0 %v425
        %v447 = vpop.f32.mrf.mxu0
        %v448 = vadd.f32 0.0, %v447
        %449 = vdwg.mxu0
        %vm450 = vnez %v422
        %v451 = vsel %vm450, 16843009, 0
        %v452 = vunpack.c.0.s8 %v451
        %vm453 = vcmp.ne.s32.totalorder %v452, 0
        %v454 = vsel %vm453, -1.442695e+09, %v448
        %vm455 = vcmask 64512
        %v456 = vsel %vm455, %v454, -inf
        %457 = vmax.xlane.f32.xlu0 %v456
        %v458 = vpop.xlane.xlu0 %457
        %v459 = vsub.f32 %v454, %v458
        %v460 = vpow.pop %v459
        %v461 = vsel %vm455, %v460, 0.0
        %462 = vadd.xlane.f32.xlu0 %v461
        %v463 = vpop.xlane.xlu0 %462
        %v464 = vrcp.pop %v463
        %v465 = vmul.f32 %v463, %v464
        %v466 = vsub.f32 2.0, %v465
        %v467 = vmul.f32 %v464, %v466
        %v468 = vmul.f32 %v460, %v467
        %v470 = vsel %vm455, %v468, 0
        %472 = vmatpush.msra.mxu0 0.0
        %473 = vmatpush.msra.mxu0 0.0
        %474 = vmatpush.msra.mxu0 0.0
        %475 = vmatpush.msra.mxu0 0.0
        %476 = vmatpush.msra.mxu0 0.0
        %477 = vmatpush.msra.mxu0 0.0
        %478 = vmatpush.msra.mxu0 0.0
        %479 = vmatpush.msra.mxu0 0.0
        %480 = vmatpush.msra.mxu0 0.0
        %481 = vmatpush.msra.mxu0 0.0
        %482 = vmatpush.msra.mxu0 0.0
        %483 = vmatpush.msra.mxu0 0.0
        %484 = vmatpush.msra.mxu0 0.0
        %485 = vmatpush.msra.mxu0 0.0
        %486 = vmatpush.msra.mxu0 0.0
        %487 = vmatpush.msra.mxu0 %v421
        %488 = vmatmul.f32.gmra.mxu0 %v470
        %v489 = vpop.f32.mrf.mxu0
        %v490 = vadd.f32 0.0, %v489
        %491 = vdwg.mxu0
        %492 = vst.msk [vmem:[%s415] sm:$0xff] %vm455, %v468
        %493 = vst.msk [vmem:[%s408] sm:$0xff] %vm423, %v490
        %s494 = sand.u32 %s179, 1
        %s495 = scalar_lea.sflag [#allocation4], %s494
        %s496 = sand.u32 %s179, 1
        %s497 = smul.addr %s496, 8
        %s498 = scalar_lea.vmem [#allocation10], %s497
        %s499 = sand.u32 %s209, 1
        %s500 = scalar_lea.sflag [#allocation12], %s499
        %s501 = sand.u32 %s209, 1
        %s502 = smul.addr %s501, 8
        %s503 = scalar_lea.vmem [#allocation11], %s502
        // Predicated region
        $region53: #{tpu_custom_call.1} parent=35 // pred_check
          %p504 = pneg %p189
        $region54: #{tpu_custom_call.1} parent=35 // pred_check_branch
          %506 = sbr.rel (%p504) target = $region56
        $region55: #{tpu_custom_call.1} parent=35 // pred_region
          %508 = vsyncadd %s495, 0
          %s509 = sadd.s32 %s39, %s38
          %s510 = smul.addr %s37, 4
          %s511 = sadd.s32 %s509, %s510
          %s512 = smul.addr %s511, 8
          %s513 = scalar_lea.hbm %s4, %s512
          %s515 = sshll.u32 %s498, 4
          %s516 = int_to_ptr.vmem [resolvable:$true] %s515
          %s517 = sshll.u32 %s513, 4
          %s518 = int_to_ptr.hbm [resolvable:$true] %s517
          %520 = dma.vmem_to_hbm [thread:$0]  %s516, 128, %s518, %s495
        $region56: #{tpu_custom_call.1} parent=35 // pred_fallthru
          _
        // Predicated region
        $region57: #{tpu_custom_call.1} parent=35 // pred_check
          %p521 = pneg %p219
        $region58: #{tpu_custom_call.1} parent=35 // pred_check_branch
          %523 = sbr.rel (%p521) target = $region60
        $region59: #{tpu_custom_call.1} parent=35 // pred_region
          %525 = vsyncadd %s500, 0
          %s526 = sadd.s32 %s39, %s38
          %s527 = smul.addr %s37, 4
          %s528 = sadd.s32 %s526, %s527
          %s529 = smul.addr %s528, 8
          %s530 = scalar_lea.hbm %s5, %s529
          %s532 = sshll.u32 %s503, 4
          %s533 = int_to_ptr.vmem [resolvable:$true] %s532
          %s534 = sshll.u32 %s530, 4
          %s535 = int_to_ptr.hbm [resolvable:$true] %s534
          %537 = dma.vmem_to_hbm [thread:$0]  %s533, 128, %s535, %s500
        $region60: #{tpu_custom_call.1} parent=35 // pred_fallthru
          _
      $region36: #{tpu_custom_call.1} parent=5 // pred_fallthru
        _
      %p538 = scmp.le.s32.totalorder 2, %s27
      // Predicated region
      $region61: #{tpu_custom_call.1} parent=5 // pred_check
        %p539 = pneg %p538
      $region62: #{tpu_custom_call.1} parent=5 // pred_check_branch
        %541 = sbr.rel (%p539) target = $region64
      $region63: #{tpu_custom_call.1} parent=5 // pred_region
        %s542 = ssub.s32 %s27, 2
        // Predicated region
        $region65: #{tpu_custom_call.1} parent=63 // pred_check
          %p543 = pneg %p195
        $region66: #{tpu_custom_call.1} parent=63 // pred_check_branch
          %545 = sbr.rel (%p543) target = $region68
        $region67: #{tpu_custom_call.1} parent=63 // pred_region
          %s546 = sand.u32 %s180, 1
          %s547 = scalar_lea.sflag [#allocation4], %s546
          %s548 = sand.u32 %s180, 1
          %s549 = smul.addr %s548, 8
          %s550 = scalar_lea.vmem [#allocation10], %s549
          %552 = dma.done %s547, 128
        $region68: #{tpu_custom_call.1} parent=63 // pred_fallthru
          _
        // Predicated region
        $region69: #{tpu_custom_call.1} parent=63 // pred_check
          %p553 = pneg %p225
        $region70: #{tpu_custom_call.1} parent=63 // pred_check_branch
          %555 = sbr.rel (%p553) target = $region72
        $region71: #{tpu_custom_call.1} parent=63 // pred_region
          %s556 = sand.u32 %s210, 1
          %s557 = scalar_lea.sflag [#allocation12], %s556
          %s558 = sand.u32 %s210, 1
          %s559 = smul.addr %s558, 8
          %s560 = scalar_lea.vmem [#allocation11], %s559
          %562 = dma.done %s557, 128
        $region72: #{tpu_custom_call.1} parent=63 // pred_fallthru
          _
      $region64: #{tpu_custom_call.1} parent=5 // pred_fallthru
        _
    $region6: #{tpu_custom_call.1} parent=1 // loop_footer
      %s31 = sadd.s32 1, %s27
    $region7: #{tpu_custom_call.1} parent=1 // loop_footer_branch
      %26 = sbr.rel target = $region3
    $region8: #{tpu_custom_call.1} parent=1 // loop_exit
      _
    %563 = vsyncpa [#allocation3], 1
    %s564 = scalar_lea.sflag [#allocation3], 1
    %565 = vsyncpa %s564, 1
    %566 = vsyncpa [#allocation6], 1
    %s567 = scalar_lea.sflag [#allocation6], 1
    %568 = vsyncpa %s567, 1
    %569 = vsyncpa [#allocation9], 1
    %s570 = scalar_lea.sflag [#allocation9], 1
    %571 = vsyncpa %s570, 1
    %572 = vsyncpa [#allocation4], 1
    %s573 = scalar_lea.sflag [#allocation4], 1
    %574 = vsyncpa %s573, 1
    %575 = vsyncpa [#allocation12], 1
    %s576 = scalar_lea.sflag [#allocation12], 1
    %577 = vsyncpa %s576, 1

</llo_original>
